<compile_context>
chip_gen: v5e
topology: v5e:2x2
jax: 0.10.0
libtpu: 0.0.40
codegen_flags: <defaults>
</compile_context>

<pallas_src>
import functools

import jax
import jax.numpy as jnp
import numpy as np
from jax.experimental import pallas as pl
from jax.experimental.pallas import tpu as pltpu


# ----------------------------------------------------------------------------
# Kernel 1: Euclidean distance "linear" layer  out[n, m] = ||x[n] - w[m]||_2
#           Tiled over rows; the weight block stays resident in VMEM.
# ----------------------------------------------------------------------------
def _cdist_kernel(x_ref, w_ref, o_ref):
    x = x_ref[...].astype(jnp.float32)              # (TR, D)
    w = w_ref[...].astype(jnp.float32)              # (M, D)
    xs = jnp.sum(x * x, axis=-1, keepdims=True)     # (TR, 1)
    ws = jnp.sum(w * w, axis=-1, keepdims=True)     # (M, 1)
    # ||x - w||^2 = ||x||^2 + ||w||^2 - 2 x.w   (MXU matmul)
    d2 = xs + ws.T - 2.0 * jnp.dot(x, w.T, preferred_element_type=jnp.float32)
    o_ref[...] = jnp.sqrt(jnp.maximum(d2, 0.0)).astype(o_ref.dtype)


def pallas_cdist(x, w, *, row_tile=512):
    """x: (N, D), w: (M, D) -> (N, M) Euclidean distances, tiled over rows."""
    N, D = x.shape
    M, _ = w.shape
    # row_tile is a multiple of 8; full-extent block if N is small.
    tr = N if N <= row_tile else row_tile
    grid = (pl.cdiv(N, tr),)

    # 2x double-buffered input/output tiles + resident weights + f32 temps.
    fp32 = 4
    footprint = (2 * tr * D + 2 * tr * M + M * D + 2 * tr * M) * fp32
    vmem_limit = int(min(max(2 * footprint, 32 * 1024 * 1024), 48 * 1024 * 1024))

    return pl.pallas_call(
        _cdist_kernel,
        out_shape=jax.ShapeDtypeStruct((N, M), x.dtype),
        grid=grid,
        in_specs=[
            pl.BlockSpec((tr, D), lambda i: (i, 0)),
            pl.BlockSpec((M, D), lambda i: (0, 0)),     # weights stay resident
        ],
        out_specs=pl.BlockSpec((tr, M), lambda i: (i, 0)),
        compiler_params=pltpu.CompilerParams(
            dimension_semantics=("parallel",),
            vmem_limit_bytes=vmem_limit,
        ),
    )(x, w)


# ----------------------------------------------------------------------------
# Kernel 2: causal attention with negative-squared-L2-distance similarity.
#   Flash-style: grid = (batch, q-tile, kv-tile), online softmax in scratch.
#   All heads handled per grid step; output written lane-dense as 'b n (h d)'.
# ----------------------------------------------------------------------------
def _l2_flash_attn_kernel(q_ref, k_ref, v_ref, o_ref,
                          q2_sc, m_sc, l_sc, acc_sc,
                          *, scale, tq, tk, heads, dim_head):
    qi = pl.program_id(1)
    ki = pl.program_id(2)
    nk = pl.num_programs(2)

    @pl.when(ki == 0)
    def _init():
        q = q_ref[0].astype(jnp.float32)                        # (H, tq, Dh)
        # Hoisted per-(batch, q-tile) state: scaled query norms + softmax stats.
        q2_sc[...] = scale * jnp.sum(q * q, axis=-1, keepdims=True)
        m_sc[...] = jnp.full(m_sc.shape, -1e30, dtype=m_sc.dtype)
        l_sc[...] = jnp.zeros(l_sc.shape, dtype=l_sc.dtype)
        acc_sc[...] = jnp.zeros(acc_sc.shape, dtype=acc_sc.dtype)

    # Causal block skipping: this kv block contributes only if its first
    # column index is <= the last row index of the q block.
    @pl.when(ki * tk <= qi * tq + (tq - 1))
    def _compute():
        q = q_ref[0].astype(jnp.float32)                        # (H, tq, Dh)
        k = k_ref[0].astype(jnp.float32)                        # (H, tk, Dh)
        v = v_ref[0].astype(jnp.float32)                        # (H, tk, Dh)

        # sim = -scale*||q-k||^2 = 2*scale*(q.k) - scale*||q||^2 - scale*||k||^2
        k2 = scale * jnp.sum(k * k, axis=-1)                    # (H, tk)
        qk = jnp.einsum('hid,hjd->hij', q, k,
                        preferred_element_type=jnp.float32)     # (H, tq, tk)
        sim = (2.0 * scale) * qk - q2_sc[...] - k2[:, None, :]

        row = qi * tq + jax.lax.broadcasted_iota(jnp.int32, (tq, tk), 0)
        col = ki * tk + jax.lax.broadcasted_iota(jnp.int32, (tq, tk), 1)
        sim = jnp.where((col > row)[None, :, :], -1e30, sim)    # causal mask

        m_prev = m_sc[...]                                      # (H, tq, 1)
        m_new = jnp.maximum(m_prev, jnp.max(sim, axis=-1, keepdims=True))
        alpha = jnp.exp(m_prev - m_new)
        p = jnp.exp(sim - m_new)                                # (H, tq, tk)
        l_sc[...] = alpha * l_sc[...] + jnp.sum(p, axis=-1, keepdims=True)
        acc_sc[...] = alpha * acc_sc[...] + jnp.einsum(
            'hij,hjd->hid', p, v, preferred_element_type=jnp.float32)
        m_sc[...] = m_new

    @pl.when(ki == nk - 1)
    def _finalize():
        out = acc_sc[...] / l_sc[...]                           # (H, tq, Dh)
        # Store lane-dense, directly in 'b n (h d)' layout.
        out = jnp.transpose(out, (1, 0, 2)).reshape(tq, heads * dim_head)
        o_ref[0] = out.astype(o_ref.dtype)


def _pick_tile(n, pref):
    """Largest tile <= pref that exactly divides n (multiple of 8), else n."""
    if n <= pref:
        return n
    for t in range(pref, 7, -8):
        if n % t == 0:
            return t
    return n


def pallas_l2_attention(q, k, v, scale, *, q_tile=256, kv_tile=256):
    """q, k, v: (B, H, N, Dh) -> (B, N, H*Dh) causal neg-L2-dist attention."""
    B, H, N, Dh = q.shape
    tq = _pick_tile(N, q_tile)
    tk = _pick_tile(N, kv_tile)
    grid = (B, N // tq, N // tk)

    fp32 = 4
    itm = q.dtype.itemsize
    footprint = (
        2 * (H * tq * Dh + 2 * H * tk * Dh + tq * H * Dh) * itm   # pipelined blocks
        + (3 * H * tq + H * tq * Dh) * fp32                       # scratch (est.)
        + 3 * H * tq * tk * fp32                                  # sim/p temporaries
    )
    vmem_limit = int(min(max(2 * footprint, 32 * 1024 * 1024), 48 * 1024 * 1024))

    kernel = functools.partial(_l2_flash_attn_kernel, scale=scale, tq=tq, tk=tk,
                               heads=H, dim_head=Dh)
    return pl.pallas_call(
        kernel,
        out_shape=jax.ShapeDtypeStruct((B, N, H * Dh), q.dtype),
        grid=grid,
        in_specs=[
            pl.BlockSpec((1, H, tq, Dh), lambda b, qi, ki: (b, 0, qi, 0)),
            pl.BlockSpec((1, H, tk, Dh), lambda b, qi, ki: (b, 0, ki, 0)),
            pl.BlockSpec((1, H, tk, Dh), lambda b, qi, ki: (b, 0, ki, 0)),
        ],
        out_specs=pl.BlockSpec((1, tq, H * Dh), lambda b, qi, ki: (b, qi, 0)),
        scratch_shapes=[
            pltpu.VMEM((H, tq, 1), jnp.float32),    # scale * ||q||^2
            pltpu.VMEM((H, tq, 1), jnp.float32),    # running max
            pltpu.VMEM((H, tq, 1), jnp.float32),    # running denominator
            pltpu.VMEM((H, tq, Dh), jnp.float32),   # running numerator
        ],
        compiler_params=pltpu.CompilerParams(
            dimension_semantics=("parallel", "parallel", "arbitrary"),
            vmem_limit_bytes=vmem_limit,
        ),
    )(q, k, v)


# ----------------------------------------------------------------------------
# Full Attention module forward (Pallas kernels + JAX glue for head split).
# ----------------------------------------------------------------------------
def attention_forward(x, w_qkv, w_out, *, heads, dim_head):
    """
    x:     (B, N, dim)
    w_qkv: (3*heads*dim_head, dim)       -- L2DistanceLinear weights (to_qkv)
    w_out: (dim, heads*dim_head)         -- L2DistanceLinear weights (to_out)
    """
    B, N, dim = x.shape
    dim_inner = heads * dim_head
    scale = dim_head ** -0.5

    # to_qkv: qkv[b, n, m] = ||x[b, n] - w_qkv[m]||_2
    qkv = pallas_cdist(x.reshape(B * N, dim), w_qkv)
    qkv = qkv.reshape(B, N, 3, heads, dim_head)
    # 'b n (qkv h d) -> qkv b h n d' (head split in JAX; merge happens in-kernel)
    qkv = jnp.transpose(qkv, (2, 0, 3, 1, 4))
    q, k, v = qkv[0], qkv[1], qkv[2]

    # causal neg-squared-L2-distance attention; output already in 'b n (h d)'.
    out = pallas_l2_attention(q, k, v, scale)                   # (B, N, dim_inner)

    # to_out: cdist(out, w_out)
    y = pallas_cdist(out.reshape(B * N, dim_inner), w_out).reshape(B, N, dim)
    return y


# ----------------------------------------------------------------------------
# Pure-JAX reference (mirrors the PyTorch forward exactly) for verification.
# ----------------------------------------------------------------------------
def _ref_cdist(x, w):
    xs = jnp.sum(x * x, axis=-1, keepdims=True)
    ws = jnp.sum(w * w, axis=-1, keepdims=True)
    d2 = xs + ws.T - 2.0 * (x @ w.T)
    return jnp.sqrt(jnp.maximum(d2, 0.0))


def _ref_forward(x, w_qkv, w_out, *, heads, dim_head):
    B, N, dim = x.shape
    dim_inner = heads * dim_head
    scale = dim_head ** -0.5
    qkv = _ref_cdist(x.reshape(B * N, dim), w_qkv).reshape(B, N, 3 * dim_inner)
    qkv = qkv.reshape(B, N, 3, heads, dim_head)
    qkv = jnp.transpose(qkv, (2, 0, 3, 1, 4)).reshape(3, B * heads, N, dim_head)
    q, k, v = qkv[0], qkv[1], qkv[2]
    q2 = jnp.sum(q * q, axis=-1, keepdims=True)
    k2 = jnp.sum(k * k, axis=-1, keepdims=True)
    d2 = q2 + jnp.swapaxes(k2, -1, -2) - 2.0 * jnp.einsum('bid,bjd->bij', q, k)
    sim = -d2 * scale
    mask = jnp.triu(jnp.ones((N, N), dtype=bool), k=1)
    sim = jnp.where(mask[None], -jnp.finfo(sim.dtype).max, sim)
    attn = jax.nn.softmax(sim, axis=-1)
    out = jnp.einsum('bij,bjd->bid', attn, v)
    out = out.reshape(B, heads, N, dim_head)
    out = jnp.transpose(out, (0, 2, 1, 3)).reshape(B, N, dim_inner)
    return _ref_cdist(out.reshape(B * N, dim_inner), w_out).reshape(B, N, dim)


if __name__ == "__main__":
    # Small shapes consistent with the module's forward.
    B, N, dim = 2, 8, 32
    heads, dim_head = 4, 8
    dim_inner = heads * dim_head

    key = jax.random.PRNGKey(0)
    kx, kqkv, kout = jax.random.split(key, 3)
    x = jax.random.normal(kx, (B, N, dim), dtype=jnp.float32)
    # L2DistanceLinear weights: torch.randn(dim_out, dim) -> deterministic normals here.
    w_qkv = jax.random.normal(kqkv, (3 * dim_inner, dim), dtype=jnp.float32)
    w_out = jax.random.normal(kout, (dim, dim_inner), dtype=jnp.float32)

    y = attention_forward(x, w_qkv, w_out, heads=heads, dim_head=dim_head)
    y = jax.block_until_ready(y)

    y_ref = _ref_forward(x, w_qkv, w_out, heads=heads, dim_head=dim_head)
    np.testing.assert_allclose(np.asarray(y), np.asarray(y_ref), rtol=1e-4, atol=1e-4)

    print("KERNEL_OK")
</pallas_src>

<mosaic_0001>
module attributes {stable_mosaic.version = 11 : i64} {
  func.func @_cdist_kernel(%arg0: i32, %arg1: memref<16x32xf32, #tpu.memory_space<vmem>>, %arg2: memref<96x32xf32, #tpu.memory_space<vmem>>, %arg3: memref<16x96xf32, #tpu.memory_space<vmem>>) attributes {dimension_semantics = [#tpu.dimension_semantics<parallel>], iteration_bounds = array<i64: 1>, scalar_prefetch = 0 : i64, scratch_operands = 0 : i64, tpu.core_type = #tpu.core_type<tc>, window_params = [{transform_indices = @transform_0, window_bounds = array<i64: 16, 32>}, {pipeline_mode = #tpu.pipeline_mode<synchronous>, transform_indices = @transform_1, window_bounds = array<i64: 96, 32>}, {transform_indices = @transform_2, window_bounds = array<i64: 16, 96>}]} {
    %c0 = arith.constant 0 : index
    %c0_0 = arith.constant 0 : index
    %0 = vector.load %arg1[%c0, %c0_0] : memref<16x32xf32, #tpu.memory_space<vmem>>, vector<16x32xf32>
    %c0_1 = arith.constant 0 : index
    %c0_2 = arith.constant 0 : index
    %1 = vector.load %arg2[%c0_1, %c0_2] : memref<96x32xf32, #tpu.memory_space<vmem>>, vector<96x32xf32>
    %2 = arith.mulf %0, %0 : vector<16x32xf32>
    %cst = arith.constant dense<0.000000e+00> : vector<16xf32>
    %3 = vector.multi_reduction <add>, %2, %cst [1] : vector<16x32xf32> to vector<16xf32>
    %4 = vector.shape_cast %3 : vector<16xf32> to vector<16x1xf32>
    %5 = arith.mulf %1, %1 : vector<96x32xf32>
    %cst_3 = arith.constant dense<0.000000e+00> : vector<96xf32>
    %6 = vector.multi_reduction <add>, %5, %cst_3 [1] : vector<96x32xf32> to vector<96xf32>
    %7 = vector.shape_cast %6 : vector<96xf32> to vector<96x1xf32>
    %8 = tpu.transpose %7, [1, 0] : vector<96x1xf32> -> vector<1x96xf32>
    %9 = vector.broadcast %4 : vector<16x1xf32> to vector<16x96xf32>
    %10 = vector.broadcast %8 : vector<1x96xf32> to vector<16x96xf32>
    %11 = arith.addf %9, %10 : vector<16x96xf32>
    %12 = tpu.transpose %1, [1, 0] : vector<96x32xf32> -> vector<32x96xf32>
    %cst_4 = arith.constant dense<0.000000e+00> : vector<16x96xf32>
    %13 = tpu.matmul %0, %12, %cst_4 {dimension_numbers = #tpu.dot_dimension_numbers<[1], [0], [0], [1], [0, 0, 1, 1], [], []>} : vector<16x32xf32>, vector<32x96xf32>, vector<16x96xf32> -> vector<16x96xf32>
    %cst_5 = arith.constant 2.000000e+00 : f32
    %14 = vector.broadcast %cst_5 : f32 to vector<16x96xf32>
    %15 = arith.mulf %14, %13 : vector<16x96xf32>
    %16 = arith.subf %11, %15 : vector<16x96xf32>
    %cst_6 = arith.constant 0.000000e+00 : f32
    %17 = vector.broadcast %cst_6 : f32 to vector<16x96xf32>
    %18 = arith.maximumf %16, %17 : vector<16x96xf32>
    %19 = math.sqrt %18 : vector<16x96xf32>
    %c0_7 = arith.constant 0 : index
    %c0_8 = arith.constant 0 : index
    %20 = vector.load %arg3[%c0_7, %c0_8] : memref<16x96xf32, #tpu.memory_space<vmem>>, vector<16x96xf32>
    tpu.vector_store %arg3[%c0_7, %c0_8], %19 {strides = array<i32>} : memref<16x96xf32, #tpu.memory_space<vmem>>, vector<16x96xf32>,
    return
  }
  func.func @transform_0(%arg0: i32) -> (i32, i32) {
    %c0_i32 = arith.constant 0 : i32
    %c0_i32_0 = arith.constant 0 : i32
    return %arg0, %c0_i32 : i32, i32
  }
  func.func @transform_1(%arg0: i32) -> (i32, i32) {
    %c0_i32 = arith.constant 0 : i32
    %c0_i32_0 = arith.constant 0 : i32
    %c0_i32_1 = arith.constant 0 : i32
    return %c0_i32, %c0_i32_0 : i32, i32
  }
  func.func @transform_2(%arg0: i32) -> (i32, i32) {
    %c0_i32 = arith.constant 0 : i32
    %c0_i32_0 = arith.constant 0 : i32
    return %arg0, %c0_i32 : i32, i32
  }
}

</mosaic_0001>

<llo_original>
// kernel: tpu_custom_call.1
$region0: #{tpu_custom_call.1}
  #allocation0 [shape = 'u32[]', space=smem, size = 0x4, offset = 0x4, fixed_abs, tag = 'smem constant byte address 0x4 - core index']
  #allocation1 [shape = 'u32[72,128]{1,0:T(1,128)}', space=vmem, size = 0x9000, scoped, tag = 'internal scratch']
  %s0 = inlined_call_operand.vmem [shape: f32[16,32], index: 0, kind: input, shape index: {}]
  %s1 = inlined_call_operand.vmem [shape: f32[96,32], index: 1, kind: input, shape index: {}]
  %s2 = inlined_call_operand.hbm [shape: f32[16,96], index: 2, kind: output, shape index: {}]
  %s3 = sld [smem:[#allocation0]]
  $region18: #{tpu_custom_call.1} parent=0
    _
  %s5 = ssub.s32 1, %s3
  %s6 = scalar_select 0, %s5, %s3
  $region1: #{tpu_custom_call.1} parent=0
    #allocation2 [shape = 'u8[8192]{0}', space=vmem, size = 0x2000, scoped, tag = 'output window, operand 0, single buffered']
    #allocation3 [shape = 's32[1]{0}', space=sflag, size = 0x4, scoped, tag = 'scoped memory for tpu_custom_call.1']
    %7 = vsyncpa [#allocation3], 0
    // Predicated region
    $region2: #{tpu_custom_call.1} parent=1 // pred_check
      _
    $region3: #{tpu_custom_call.1} parent=1 // pred_check_branch
      %9 = sbr.rel (0) target = $region5
    $region4: #{tpu_custom_call.1} parent=1 // pred_region
      _
    $region5: #{tpu_custom_call.1} parent=1 // pred_fallthru
      _
    // Predicated region
    $region6: #{tpu_custom_call.1} parent=1 // pred_check
      _
    $region7: #{tpu_custom_call.1} parent=1 // pred_check_branch
      %11 = sbr.rel (0) target = $region9
    $region8: #{tpu_custom_call.1} parent=1 // pred_region
      _
    $region9: #{tpu_custom_call.1} parent=1 // pred_fallthru
      _
    %v12 = vld [vmem:[%s0] sm:$0xff]
    %v13 = vld [vmem:[%s0 + $0x8] sm:$0xff]
    %v14 = vld [vmem:[%s1] sm:$0xff]
    %v15 = vld [vmem:[%s1 + $0x8] sm:$0xff]
    %v16 = vld [vmem:[%s1 + $0x10] sm:$0xff]
    %v17 = vld [vmem:[%s1 + $0x18] sm:$0xff]
    %v18 = vld [vmem:[%s1 + $0x20] sm:$0xff]
    %v19 = vld [vmem:[%s1 + $0x28] sm:$0xff]
    %v20 = vld [vmem:[%s1 + $0x30] sm:$0xff]
    %v21 = vld [vmem:[%s1 + $0x38] sm:$0xff]
    %v22 = vld [vmem:[%s1 + $0x40] sm:$0xff]
    %v23 = vld [vmem:[%s1 + $0x48] sm:$0xff]
    %v24 = vld [vmem:[%s1 + $0x50] sm:$0xff]
    %v25 = vld [vmem:[%s1 + $0x58] sm:$0xff]
    %v26 = vmul.f32 %v12, %v12
    %v27 = vmul.f32 %v13, %v13
    %vm28 = vcmask 261120
    %v29 = vsel %vm28, %v26, 0.0
    %30 = vadd.xlane.f32.xlu0 %v29
    %v31 = vpop.xlane.xlu0 %30
    %v32 = vsel %vm28, %v27, 0.0
    %33 = vadd.xlane.f32.xlu0 %v32
    %v34 = vpop.xlane.xlu0 %33
    %v35 = vmul.f32 %v14, %v14
    %v36 = vmul.f32 %v15, %v15
    %v37 = vmul.f32 %v16, %v16
    %v38 = vmul.f32 %v17, %v17
    %v39 = vmul.f32 %v18, %v18
    %v40 = vmul.f32 %v19, %v19
    %v41 = vmul.f32 %v20, %v20
    %v42 = vmul.f32 %v21, %v21
    %v43 = vmul.f32 %v22, %v22
    %v44 = vmul.f32 %v23, %v23
    %v45 = vmul.f32 %v24, %v24
    %v46 = vmul.f32 %v25, %v25
    %v47 = vsel %vm28, %v35, 0.0
    %48 = vadd.xlane.f32.xlu0 %v47
    %v49 = vpop.xlane.xlu0 %48
    %v50 = vsel %vm28, %v36, 0.0
    %51 = vadd.xlane.f32.xlu0 %v50
    %v52 = vpop.xlane.xlu0 %51
    %v53 = vsel %vm28, %v37, 0.0
    %54 = vadd.xlane.f32.xlu0 %v53
    %v55 = vpop.xlane.xlu0 %54
    %v56 = vsel %vm28, %v38, 0.0
    %57 = vadd.xlane.f32.xlu0 %v56
    %v58 = vpop.xlane.xlu0 %57
    %v59 = vsel %vm28, %v39, 0.0
    %60 = vadd.xlane.f32.xlu0 %v59
    %v61 = vpop.xlane.xlu0 %60
    %v62 = vsel %vm28, %v40, 0.0
    %63 = vadd.xlane.f32.xlu0 %v62
    %v64 = vpop.xlane.xlu0 %63
    %v65 = vsel %vm28, %v41, 0.0
    %66 = vadd.xlane.f32.xlu0 %v65
    %v67 = vpop.xlane.xlu0 %66
    %v68 = vsel %vm28, %v42, 0.0
    %69 = vadd.xlane.f32.xlu0 %v68
    %v70 = vpop.xlane.xlu0 %69
    %v71 = vsel %vm28, %v43, 0.0
    %72 = vadd.xlane.f32.xlu0 %v71
    %v73 = vpop.xlane.xlu0 %72
    %v74 = vsel %vm28, %v44, 0.0
    %75 = vadd.xlane.f32.xlu0 %v74
    %v76 = vpop.xlane.xlu0 %75
    %v77 = vsel %vm28, %v45, 0.0
    %78 = vadd.xlane.f32.xlu0 %v77
    %v79 = vpop.xlane.xlu0 %78
    %v80 = vsel %vm28, %v46, 0.0
    %81 = vadd.xlane.f32.xlu0 %v80
    %v82 = vpop.xlane.xlu0 %81
    %83 = vxpose.xlu0.b32.start [1/16] %v49, 128
    %84 = vxpose.xlu0.b32.cont [2/16] %v52, 128
    %85 = vxpose.xlu0.b32.cont [3/16] %v55, 128
    %86 = vxpose.xlu0.b32.cont [4/16] %v58, 128
    %87 = vxpose.xlu0.b32.cont [5/16] %v61, 128
    %88 = vxpose.xlu0.b32.cont [6/16] %v64, 128
    %89 = vxpose.xlu0.b32.cont [7/16] %v67, 128
    %90 = vxpose.xlu0.b32.cont [8/16] %v70, 128
    %91 = vxpose.xlu0.b32.cont [9/16] %v73, 128
    %92 = vxpose.xlu0.b32.cont [10/16] %v76, 128
    %93 = vxpose.xlu0.b32.cont [11/16] %v79, 128
    %94 = vxpose.xlu0.b32.cont [12/16] %v82, 128
    %95 = vxpose.xlu0.b32.cont [13/16] 0.0, 128
    %96 = vxpose.xlu0.b32.cont [14/16] 0.0, 128
    %97 = vxpose.xlu0.b32.cont [15/16] 0.0, 128
    %98 = vxpose.xlu0.b32.end [16/16] 0.0, 128
    %v99 = vpop.trf.xlu0
    %v100 = vpop.trf.xlu0
    %v101 = vpop.trf.xlu0
    %v102 = vpop.trf.xlu0
    %v103 = vpop.trf.xlu0
    %v104 = vpop.trf.xlu0
    %v105 = vpop.trf.xlu0
    %v106 = vpop.trf.xlu0
    %v107 = vpop.trf.xlu0
    %v108 = vpop.trf.xlu0
    %v109 = vpop.trf.xlu0
    %v110 = vpop.trf.xlu0
    %v111 = vpop.trf.xlu0
    %v112 = vpop.trf.xlu0
    %v113 = vpop.trf.xlu0
    %v114 = vpop.trf.xlu0
    %v115 = vperm.slane %v99, 0
    %v116 = vadd.f32 %v31, %v115
    %v117 = vadd.f32 %v34, %v115
    %v119 = vsel %vm28, %v12, 0
    %v122 = vsel %vm28, %v13, 0
    %v125 = vsel %vm28, %v14, 0
    %v128 = vsel %vm28, %v15, 0
    %v131 = vsel %vm28, %v16, 0
    %v134 = vsel %vm28, %v17, 0
    %v137 = vsel %vm28, %v18, 0
    %v140 = vsel %vm28, %v19, 0
    %v143 = vsel %vm28, %v20, 0
    %v146 = vsel %vm28, %v21, 0
    %v149 = vsel %vm28, %v22, 0
    %v152 = vsel %vm28, %v23, 0
    %v155 = vsel %vm28, %v24, 0
    %v158 = vsel %vm28, %v25, 0
    %160 = vmatpush.xpose.msra.mxu0 0.0
    %161 = vmatpush.xpose.msra.mxu0 0.0
    %162 = vmatpush.xpose.msra.mxu0 0.0
    %163 = vmatpush.xpose.msra.mxu0 0.0
    %164 = vmatpush.xpose.msra.mxu0 %v158
    %165 = vmatpush.xpose.msra.mxu0 %v155
    %166 = vmatpush.xpose.msra.mxu0 %v152
    %167 = vmatpush.xpose.msra.mxu0 %v149
    %168 = vmatpush.xpose.msra.mxu0 %v146
    %169 = vmatpush.xpose.msra.mxu0 %v143
    %170 = vmatpush.xpose.msra.mxu0 %v140
    %171 = vmatpush.xpose.msra.mxu0 %v137
    %172 = vmatpush.xpose.msra.mxu0 %v134
    %173 = vmatpush.xpose.msra.mxu0 %v131
    %174 = vmatpush.xpose.msra.mxu0 %v128
    %175 = vmatpush.xpose.msra.mxu0 %v125
    %176 = vmatmul.f32.gmra.mxu0 %v119
    %v177 = vpop.f32.mrf.mxu0
    %v178 = vadd.f32 0.0, %v177
    %179 = vmatmul.f32.gmra.mxu0 %v122
    %v180 = vpop.f32.mrf.mxu0
    %v181 = vadd.f32 0.0, %v180
    %182 = vdwg.mxu0
    %v183 = vmul.f32 %v178, 2.0
    %v184 = vmul.f32 %v181, 2.0
    %v185 = vsub.f32 %v116, %v183
    %v186 = vsub.f32 %v117, %v184
    %v187 = vmax.f32 %v185, 0.0
    %v188 = vmax.f32 %v186, 0.0
    %v189 = vrsqrt.pop %v187
    %v190 = vmul.f32 %v189, %v187
    %v191 = vmul.f32 %v190, %v189
    %v192 = vmul.f32 0.5, %v191
    %v193 = vsub.f32 1.5, %v192
    %v194 = vmul.f32 %v189, %v193
    %v195 = vmul.f32 %v187, %v194
    %vm196 = vcmp.eq.f32.partialorder %v187, inf
    %v197 = vsel %vm196, %v187, %v195
    %vm198 = vcmp.eq.f32.partialorder %v187, 0.0
    %v199 = vand.u32 %v187, 2147483648
    %v200 = vsel %vm198, %v199, %v197
    %v201 = vrsqrt.pop %v188
    %v202 = vmul.f32 %v201, %v188
    %v203 = vmul.f32 %v202, %v201
    %v204 = vmul.f32 0.5, %v203
    %v205 = vsub.f32 1.5, %v204
    %v206 = vmul.f32 %v201, %v205
    %v207 = vmul.f32 %v188, %v206
    %vm208 = vcmp.eq.f32.partialorder %v188, inf
    %v209 = vsel %vm208, %v188, %v207
    %vm210 = vcmp.eq.f32.partialorder %v188, 0.0
    %v211 = vand.u32 %v188, 2147483648
    %v212 = vsel %vm210, %v211, %v209
    %vm213 = vcmask 785408
    %214 = vst.msk [vmem:[#allocation2] sm:$0xff] %vm213, %v200
    %215 = vst.msk [vmem:[#allocation2 + $0x8] sm:$0xff] %vm213, %v212
    // Predicated region
    $region10: #{tpu_custom_call.1} parent=1 // pred_check
      _
    $region11: #{tpu_custom_call.1} parent=1 // pred_check_branch
      %217 = sbr.rel (0) target = $region13
    $region12: #{tpu_custom_call.1} parent=1 // pred_region
      %219 = vsyncadd [#allocation3], 0
      %s220 = sshll.u32 [#allocation2], 4
      %s221 = int_to_ptr.vmem [resolvable:$true] %s220
      %s222 = sshll.u32 %s2, 4
      %s223 = int_to_ptr.hbm [resolvable:$true] %s222
      %228 = dma.vmem_to_hbm [thread:$0]  %s221, 256, %s223, [#allocation3], 128, 128, 8
    $region13: #{tpu_custom_call.1} parent=1 // pred_fallthru
      _
    // Predicated region
    $region14: #{tpu_custom_call.1} parent=1 // pred_check
      _
    $region15: #{tpu_custom_call.1} parent=1 // pred_check_branch
      %230 = sbr.rel (0) target = $region17
    $region16: #{tpu_custom_call.1} parent=1 // pred_region
      %232 = dma.done [#allocation3], 256
    $region17: #{tpu_custom_call.1} parent=1 // pred_fallthru
      _
    %233 = vsyncpa [#allocation3], 1

</llo_original>
